<compile_context>
chip_gen: v7x
topology: tpu7x:2x2x1
jax: 0.10.0
libtpu: 0.0.40
codegen_flags: <defaults>
</compile_context>

<pallas_src>
import functools

import jax
import jax.numpy as jnp
from jax.experimental import pallas as pl
from jax.experimental.pallas import tpu as pltpu


def _round_up(x, m):
    return -(-x // m) * m


def _choose_tiles(n_rows, n_cols, itemsize, target_bytes=2 * 1024 * 1024):
    """Pick (tile_rows, tile_cols): ~target_bytes per input block, (8,128) aligned."""
    tc = min(_round_up(n_cols, 128), 2048)
    tr = _round_up(max(8, target_bytes // (tc * itemsize)), 8)
    tr = min(tr, _round_up(n_rows, 8), 1024)
    return tr, tc


# ---------------------------------------------------------------------------
# Kernel A (primary path): mask generated in-kernel from per-row valid lengths.
# Inputs: pred/tgt tiles (tr, tc) and a (tr, 1) int32 per-row-length tile.
# ---------------------------------------------------------------------------
def _len_masked_sse_kernel(pred_ref, tgt_ref, len_ref, out_ref, acc_ref, *,
                           n_rows, n_cols):
    i = pl.program_id(0)  # row-tile index
    j = pl.program_id(1)  # time-tile index

    @pl.when((i == 0) & (j == 0))
    def _init():
        acc_ref[...] = jnp.zeros_like(acc_ref)

    tr, tc = acc_ref.shape
    row_ids = i * tr + jax.lax.broadcasted_iota(jnp.int32, (tr, tc), 0)
    col_ids = j * tc + jax.lax.broadcasted_iota(jnp.int32, (tr, tc), 1)
    lens = len_ref[...]  # (tr, 1) int32
    valid = (col_ids < lens) & (row_ids < n_rows) & (col_ids < n_cols)

    diff = pred_ref[...].astype(jnp.float32) - tgt_ref[...].astype(jnp.float32)
    # Elementwise accumulate into a tile-shaped f32 VMEM accumulator (VPU only).
    # jnp.where guards against garbage/NaN in out-of-bounds partial blocks.
    acc_ref[...] += jnp.where(valid, diff * diff, 0.0)

    @pl.when((i == pl.num_programs(0) - 1) & (j == pl.num_programs(1) - 1))
    def _finalize():
        out_ref[0, 0] = jnp.sum(acc_ref[...])  # single cross-lane reduce


# ---------------------------------------------------------------------------
# Kernel B (fallback path): arbitrary explicit mask streamed as f32 tiles.
# ---------------------------------------------------------------------------
def _masked_sse_kernel(pred_ref, tgt_ref, mask_ref, out_ref, acc_ref, *,
                       n_rows, n_cols):
    i = pl.program_id(0)
    j = pl.program_id(1)

    @pl.when((i == 0) & (j == 0))
    def _init():
        acc_ref[...] = jnp.zeros_like(acc_ref)

    tr, tc = acc_ref.shape
    row_ids = i * tr + jax.lax.broadcasted_iota(jnp.int32, (tr, tc), 0)
    col_ids = j * tc + jax.lax.broadcasted_iota(jnp.int32, (tr, tc), 1)
    in_bounds = (row_ids < n_rows) & (col_ids < n_cols)
    valid = in_bounds & (mask_ref[...] > 0)

    diff = pred_ref[...].astype(jnp.float32) - tgt_ref[...].astype(jnp.float32)
    acc_ref[...] += jnp.where(valid, diff * diff, 0.0)

    @pl.when((i == pl.num_programs(0) - 1) & (j == pl.num_programs(1) - 1))
    def _finalize():
        out_ref[0, 0] = jnp.sum(acc_ref[...])


def _pallas_reduce(kernel, grid, in_arrays, in_specs, tr, tc):
    out = pl.pallas_call(
        kernel,
        out_shape=jax.ShapeDtypeStruct((1, 1), jnp.float32),
        grid_spec=pltpu.PrefetchScalarGridSpec(
            num_scalar_prefetch=0,
            grid=grid,
            in_specs=in_specs,
            out_specs=pl.BlockSpec((1, 1), lambda i, j: (0, 0),
                                   memory_space=pltpu.SMEM),
            scratch_shapes=[pltpu.VMEM((tr, tc), jnp.float32)],
        ),
        compiler_params=pltpu.CompilerParams(
            dimension_semantics=("arbitrary", "arbitrary"),
            vmem_limit_bytes=32 * 1024 * 1024,
        ),
    )(*in_arrays)
    return out[0, 0]


def masked_sse_from_lengths(pred2d, tgt2d, row_len, tile_rows=None, tile_cols=None):
    """sum((p - t)^2 over cols < row_len[row]).  pred2d/tgt2d: (R, T); row_len: (R, 1) int32."""
    R, T = pred2d.shape
    tr, tc = _choose_tiles(R, T, pred2d.dtype.itemsize)
    if tile_rows is not None:
        tr = tile_rows
    if tile_cols is not None:
        tc = tile_cols
    grid = (pl.cdiv(R, tr), pl.cdiv(T, tc))
    kernel = functools.partial(_len_masked_sse_kernel, n_rows=R, n_cols=T)
    data_spec = pl.BlockSpec((tr, tc), lambda i, j: (i, j))
    len_spec = pl.BlockSpec((tr, 1), lambda i, j: (i, 0))
    return _pallas_reduce(kernel, grid, (pred2d, tgt2d, row_len),
                          [data_spec, data_spec, len_spec], tr, tc)


def masked_sse_from_mask(pred2d, tgt2d, mask2d, tile_rows=None, tile_cols=None):
    """sum((p - t)^2 * (mask > 0)).  All inputs (R, T); mask2d float32."""
    R, T = pred2d.shape
    tr, tc = _choose_tiles(R, T, pred2d.dtype.itemsize)
    if tile_rows is not None:
        tr = tile_rows
    if tile_cols is not None:
        tc = tile_cols
    grid = (pl.cdiv(R, tr), pl.cdiv(T, tc))
    kernel = functools.partial(_masked_sse_kernel, n_rows=R, n_cols=T)
    data_spec = pl.BlockSpec((tr, tc), lambda i, j: (i, j))
    return _pallas_reduce(kernel, grid, (pred2d, tgt2d, mask2d),
                          [data_spec, data_spec, data_spec], tr, tc)


def _get_lengths(out_lens):
    """Extract per-sequence valid lengths from out_lens (dict or attr object)."""
    if isinstance(out_lens, dict):
        if "lengths" in out_lens:
            return out_lens["lengths"]
        length_mask = out_lens["mask"]
    elif hasattr(out_lens, "lengths"):
        return out_lens.lengths
    else:
        length_mask = out_lens.mask
    # out_lens.mask is a prefix (length) mask, so row-sums recover the lengths.
    return jnp.sum(length_mask.astype(jnp.int32), axis=-1)


class AttributeRegressionLoss:
    """JAX/Pallas port of the PyTorch AttributeRegressionLoss module."""

    def __init__(self, prefix=None, weight=1.0, tile_rows=None, tile_cols=None):
        self.prefix = prefix if prefix is not None else ""
        self.weight = weight
        self.tile_rows = tile_rows  # optional overrides (multiples of 8 / 128)
        self.tile_cols = tile_cols

    def __call__(self, model_output, in_lens, out_lens, global_step, mask=None):
        target = model_output["x"]          # (B, C, T)
        prediction = model_output["x_hat"]  # (B, C, T)
        B, C, T = target.shape
        R = B * C

        # Free, layout-preserving flatten to a lane-dense 2-D slab.
        # No jnp.pad: ragged row/time edges are masked inside the kernel.
        pred2d = prediction.reshape(R, T)
        tgt2d = target.reshape(R, T)

        if mask is None:
            # Default path: the mask is the per-sequence length mask from
            # out_lens.  Build it in-kernel from a tiny (B*C, 1) length vector;
            # denominator is analytic: C * sum(lengths) (== sum of the mask
            # broadcast over channels, identical to the reference when C == 1).
            lengths = _get_lengths(out_lens).astype(jnp.int32)  # (B,)
            row_len = jnp.repeat(lengths, C)[:, None]           # (B*C, 1)
            sse = masked_sse_from_lengths(pred2d, tgt2d, row_len,
                                          self.tile_rows, self.tile_cols)
            denom = jnp.sum(lengths).astype(jnp.float32) * C
        else:
            # Fallback path: arbitrary explicit boolean mask (streamed).
            assert mask.ndim == target.ndim
            mask = mask.astype(bool)
            bcast_factor = target.size // mask.size
            mask2d = jnp.broadcast_to(mask, target.shape).reshape(R, T)
            mask2d = mask2d.astype(jnp.float32)
            sse = masked_sse_from_mask(pred2d, tgt2d, mask2d,
                                       self.tile_rows, self.tile_cols)
            denom = jnp.sum(mask.astype(jnp.float32)) * bcast_factor

        # Matches `F.mse_loss(..., 'sum') / mask.sum()`; a denominator of zero
        # produces NaN/inf exactly like the PyTorch module would.
        loss = sse / denom
        return {self.prefix + "loss": (loss, self.weight)}


def _reference_loss(prediction, target, mask_bool):
    m = jnp.broadcast_to(mask_bool, target.shape)
    d = (prediction - target).astype(jnp.float32)
    num = jnp.sum(jnp.where(m, d * d, 0.0))
    den = jnp.sum(m.astype(jnp.float32))
    return num / den


if __name__ == "__main__":
    key = jax.random.PRNGKey(0)
    # Small (batch, attr_dim, time) shapes; T and B*C deliberately NOT aligned
    # to (8, 128) to exercise the no-padding / ragged-edge handling.
    B, C, T = 3, 5, 300
    k1, k2, k3 = jax.random.split(key, 3)
    target = jax.random.normal(k1, (B, C, T), dtype=jnp.float32)
    prediction = jax.random.normal(k2, (B, C, T), dtype=jnp.float32)

    lengths = jnp.array([250, 0, 137], dtype=jnp.int32)  # includes a zero-length seq
    time_ids = jnp.arange(T, dtype=jnp.int32)[None, :]
    len_mask = time_ids < lengths[:, None]               # (B, T) bool prefix mask
    out_lens = {"mask": len_mask, "lengths": lengths}
    model_output = {"x": target, "x_hat": prediction}

    ref = _reference_loss(prediction, target, len_mask[:, None, :])

    # Path 1: default (mask=None) -> length-based kernel, auto tile sizes.
    loss_fn = AttributeRegressionLoss(prefix="attr_", weight=1.0)
    loss, weight = loss_fn(model_output, None, out_lens, 0)["attr_loss"]
    loss = jax.block_until_ready(loss)
    assert jnp.allclose(loss, ref, rtol=1e-5, atol=1e-6), (loss, ref)

    # Path 1 again with tiny forced tiles so the 2-D grid has many steps
    # (exercises init/accumulate/finalize and partial edge blocks).
    loss_fn_small = AttributeRegressionLoss(prefix="attr_", weight=1.0,
                                            tile_rows=8, tile_cols=128)
    loss2, _ = loss_fn_small(model_output, None, out_lens, 0)["attr_loss"]
    loss2 = jax.block_until_ready(loss2)
    assert jnp.allclose(loss2, ref, rtol=1e-5, atol=1e-6), (loss2, ref)

    # Path 2: explicit mask -> streamed-mask fallback kernel.
    expl_mask = jax.random.bernoulli(k3, 0.5, (B, C, T))
    loss3, _ = loss_fn(model_output, None, out_lens, 0, mask=expl_mask)["attr_loss"]
    loss3 = jax.block_until_ready(loss3)
    ref3 = _reference_loss(prediction, target, expl_mask)
    assert jnp.allclose(loss3, ref3, rtol=1e-5, atol=1e-6), (loss3, ref3)

    print("KERNEL_OK")
</pallas_src>

<mosaic_0001>
module attributes {stable_mosaic.version = 11 : i64} {
  func.func @_len_masked_sse_kernel(%arg0: i32, %arg1: i32, %arg2: memref<16x384xf32, #tpu.memory_space<vmem>>, %arg3: memref<16x384xf32, #tpu.memory_space<vmem>>, %arg4: memref<16x1xi32, #tpu.memory_space<vmem>>, %arg5: memref<1x1xf32, #tpu.memory_space<smem>>, %arg6: memref<16x384xf32, #tpu.memory_space<vmem>>) attributes {dimension_semantics = [#tpu.dimension_semantics<arbitrary>, #tpu.dimension_semantics<arbitrary>], iteration_bounds = array<i64: 1, 1>, scalar_prefetch = 0 : i64, scratch_operands = 1 : i64, tpu.core_type = #tpu.core_type<tc>, window_params = [{transform_indices = @transform_0, window_bounds = array<i64: 16, 384>}, {transform_indices = @transform_1, window_bounds = array<i64: 16, 384>}, {transform_indices = @transform_2, window_bounds = array<i64: 16, 1>}, {transform_indices = @transform_3, window_bounds = array<i64: 1, 1>}]} {
    %c0_i32 = arith.constant 0 : i32
    %0 = arith.cmpi eq, %arg0, %c0_i32 : i32
    %c0_i32_0 = arith.constant 0 : i32
    %1 = arith.cmpi eq, %arg1, %c0_i32_0 : i32
    %2 = arith.andi %0, %1 : i1
    %3 = arith.extui %2 : i1 to i32
    %c0_i32_1 = arith.constant 0 : i32
    %4 = arith.cmpi ne, %3, %c0_i32_1 : i32
    scf.if %4 {
      %cst_14 = arith.constant 0.000000e+00 : f32
      %36 = vector.broadcast %cst_14 : f32 to vector<16x384xf32>
      %c0_15 = arith.constant 0 : index
      %c0_16 = arith.constant 0 : index
      %37 = vector.load %arg6[%c0_15, %c0_16] : memref<16x384xf32, #tpu.memory_space<vmem>>, vector<16x384xf32>
      tpu.vector_store %arg6[%c0_15, %c0_16], %36 {strides = array<i32>} : memref<16x384xf32, #tpu.memory_space<vmem>>, vector<16x384xf32>,
    } else {
    }
    %c16_i32 = arith.constant 16 : i32
    %5 = arith.muli %arg0, %c16_i32 : i32
    %6 = tpu.iota {dimensions = array<i32: 0>} : vector<16x384xi32>
    %7 = vector.broadcast %5 : i32 to vector<16x384xi32>
    %8 = arith.addi %7, %6 : vector<16x384xi32>
    %c384_i32 = arith.constant 384 : i32
    %9 = arith.muli %arg1, %c384_i32 : i32
    %10 = tpu.iota {dimensions = array<i32: 1>} : vector<16x384xi32>
    %11 = vector.broadcast %9 : i32 to vector<16x384xi32>
    %12 = arith.addi %11, %10 : vector<16x384xi32>
    %c0 = arith.constant 0 : index
    %c0_2 = arith.constant 0 : index
    %13 = vector.load %arg4[%c0, %c0_2] : memref<16x1xi32, #tpu.memory_space<vmem>>, vector<16x1xi32>
    %14 = vector.broadcast %13 : vector<16x1xi32> to vector<16x384xi32>
    %15 = arith.cmpi slt, %12, %14 : vector<16x384xi32>
    %c15_i32 = arith.constant 15 : i32
    %16 = vector.broadcast %c15_i32 : i32 to vector<16x384xi32>
    %17 = arith.cmpi slt, %8, %16 : vector<16x384xi32>
    %18 = arith.andi %15, %17 : vector<16x384xi1>
    %c300_i32 = arith.constant 300 : i32
    %19 = vector.broadcast %c300_i32 : i32 to vector<16x384xi32>
    %20 = arith.cmpi slt, %12, %19 : vector<16x384xi32>
    %21 = arith.andi %18, %20 : vector<16x384xi1>
    %c0_3 = arith.constant 0 : index
    %c0_4 = arith.constant 0 : index
    %22 = vector.load %arg2[%c0_3, %c0_4] : memref<16x384xf32, #tpu.memory_space<vmem>>, vector<16x384xf32>
    %c0_5 = arith.constant 0 : index
    %c0_6 = arith.constant 0 : index
    %23 = vector.load %arg3[%c0_5, %c0_6] : memref<16x384xf32, #tpu.memory_space<vmem>>, vector<16x384xf32>
    %24 = arith.subf %22, %23 : vector<16x384xf32>
    %c0_7 = arith.constant 0 : index
    %c0_8 = arith.constant 0 : index
    %25 = vector.load %arg6[%c0_7, %c0_8] : memref<16x384xf32, #tpu.memory_space<vmem>>, vector<16x384xf32>
    %26 = arith.mulf %24, %24 : vector<16x384xf32>
    %cst = arith.constant 0.000000e+00 : f32
    %27 = vector.broadcast %cst : f32 to vector<16x384xf32>
    %28 = arith.select %21, %26, %27 : vector<16x384xi1>, vector<16x384xf32>
    %29 = arith.addf %25, %28 : vector<16x384xf32>
    %c0_9 = arith.constant 0 : index
    %c0_10 = arith.constant 0 : index
    %30 = vector.load %arg6[%c0_9, %c0_10] : memref<16x384xf32, #tpu.memory_space<vmem>>, vector<16x384xf32>
    tpu.vector_store %arg6[%c0_9, %c0_10], %29 {strides = array<i32>} : memref<16x384xf32, #tpu.memory_space<vmem>>, vector<16x384xf32>,
    %c0_i32_11 = arith.constant 0 : i32
    %31 = arith.cmpi eq, %arg0, %c0_i32_11 : i32
    %c0_i32_12 = arith.constant 0 : i32
    %32 = arith.cmpi eq, %arg1, %c0_i32_12 : i32
    %33 = arith.andi %31, %32 : i1
    %34 = arith.extui %33 : i1 to i32
    %c0_i32_13 = arith.constant 0 : i32
    %35 = arith.cmpi ne, %34, %c0_i32_13 : i32
    scf.if %35 {
      %c0_14 = arith.constant 0 : index
      %c0_15 = arith.constant 0 : index
      %36 = vector.load %arg6[%c0_14, %c0_15] : memref<16x384xf32, #tpu.memory_space<vmem>>, vector<16x384xf32>
      %37 = vector.shape_cast %36 : vector<16x384xf32> to vector<1x16x384xf32>
      %cst_16 = arith.constant dense<0.000000e+00> : vector<1xf32>
      %38 = vector.multi_reduction <add>, %37, %cst_16 [1, 2] : vector<1x16x384xf32> to vector<1xf32>
      %39 = vector.shape_cast %38 : vector<1xf32> to vector<1x1x1xf32>
      %40 = vector.extract %39[0, 0, 0] : f32 from vector<1x1x1xf32>
      %c0_17 = arith.constant 0 : index
      %c0_18 = arith.constant 0 : index
      %41 = memref.load %arg5[%c0_17, %c0_18] : memref<1x1xf32, #tpu.memory_space<smem>>
      memref.store %40, %arg5[%c0_17, %c0_18] : memref<1x1xf32, #tpu.memory_space<smem>>
    } else {
    }
    return
  }
  func.func @transform_0(%arg0: i32, %arg1: i32) -> (i32, i32) {
    %c0_i32 = arith.constant 0 : i32
    return %arg0, %arg1 : i32, i32
  }
  func.func @transform_1(%arg0: i32, %arg1: i32) -> (i32, i32) {
    %c0_i32 = arith.constant 0 : i32
    return %arg0, %arg1 : i32, i32
  }
  func.func @transform_2(%arg0: i32, %arg1: i32) -> (i32, i32) {
    %c0_i32 = arith.constant 0 : i32
    %c0_i32_0 = arith.constant 0 : i32
    return %arg0, %c0_i32 : i32, i32
  }
  func.func @transform_3(%arg0: i32, %arg1: i32) -> (i32, i32) {
    %c0_i32 = arith.constant 0 : i32
    %c0_i32_0 = arith.constant 0 : i32
    %c0_i32_1 = arith.constant 0 : i32
    return %c0_i32, %c0_i32_0 : i32, i32
  }
}

</mosaic_0001>

<llo_original>
// kernel: tpu_custom_call.1
$region0: #{tpu_custom_call.1}
  #allocation0 [shape = 'u32[]', space=smem, size = 0x4, offset = 0x4, fixed_abs, tag = 'smem constant byte address 0x4 - core index']
  #allocation1 [shape = 'u32[144,128]{1,0:T(1,128)}', space=vmem, size = 0x12000, scoped, tag = 'internal scratch']
  #allocation2 [shape = 'f32[16,384]{1,0:T(8,128)}', space=vmem, size = 0x6000, scoped, tag = 'scratch operand']
  %s0 = inlined_call_operand.hbm [shape: f32[15,300], index: 0, kind: input, shape index: {}]
  %s1 = inlined_call_operand.hbm [shape: f32[15,300], index: 1, kind: input, shape index: {}]
  %s2 = inlined_call_operand.vmem [shape: s32[15,1], index: 2, kind: input, shape index: {}]
  %s3 = inlined_call_operand.hbm [shape: f32[1,1], index: 3, kind: output, shape index: {}]
  %s4 = sld [smem:[#allocation0]]
  $region38: #{tpu_custom_call.1} parent=0
    _
  %s6 = ssub.s32 1, %s4
  %s7 = scalar_select 0, %s6, %s4
  $region1: #{tpu_custom_call.1} parent=0
    #allocation3 [shape = 'u8[24576]{0}', space=vmem, size = 0x6000, scoped, tag = 'input window, operand 0, single buffered']
    #allocation4 [shape = 's32[1]{0}', space=sflag, size = 0x4, scoped, tag = 'scoped memory for tpu_custom_call.1']
    #allocation5 [shape = 's32[1]{0}', space=sflag, size = 0x4, scoped, tag = 'scoped memory for tpu_custom_call.1']
    #allocation6 [shape = 'u8[24576]{0}', space=vmem, size = 0x6000, scoped, tag = 'input window, operand 1, single buffered']
    #allocation7 [shape = 's32[1]{0}', space=sflag, size = 0x4, scoped, tag = 'scoped memory for tpu_custom_call.1']
    #allocation8 [shape = 'u8[512]{0}', space=smem, size = 0x200, scoped, tag = 'output window, operand 0, single buffered']
    %8 = vsyncpa [#allocation4], 0
    %9 = vsyncpa [#allocation7], 0
    %10 = vsyncpa [#allocation5], 0
    // Predicated region
    $region2: #{tpu_custom_call.1} parent=1 // pred_check
      _
    $region3: #{tpu_custom_call.1} parent=1 // pred_check_branch
      %12 = sbr.rel (0) target = $region5
    $region4: #{tpu_custom_call.1} parent=1 // pred_region
      %s14 = ssub.s32 768, 768
      %15 = vsyncadd [#allocation4], %s14
      %s16 = sshll.u32 [#allocation3], 4
      %s17 = int_to_ptr.vmem [resolvable:$true] %s16
      %22 = dma.hbm_to_vmem [thread:$0]  %s0, 768, %s17, [#allocation4], 384, 384, 24
    $region5: #{tpu_custom_call.1} parent=1 // pred_fallthru
      _
    // Predicated region
    $region6: #{tpu_custom_call.1} parent=1 // pred_check
      _
    $region7: #{tpu_custom_call.1} parent=1 // pred_check_branch
      %24 = sbr.rel (0) target = $region9
    $region8: #{tpu_custom_call.1} parent=1 // pred_region
      %s26 = ssub.s32 768, 768
      %27 = vsyncadd [#allocation7], %s26
      %s28 = sshll.u32 [#allocation6], 4
      %s29 = int_to_ptr.vmem [resolvable:$true] %s28
      %34 = dma.hbm_to_vmem [thread:$0]  %s1, 768, %s29, [#allocation7], 384, 384, 24
    $region9: #{tpu_custom_call.1} parent=1 // pred_fallthru
      _
    // Predicated region
    $region10: #{tpu_custom_call.1} parent=1 // pred_check
      _
    $region11: #{tpu_custom_call.1} parent=1 // pred_check_branch
      %36 = sbr.rel (0) target = $region13
    $region12: #{tpu_custom_call.1} parent=1 // pred_region
      _
    $region13: #{tpu_custom_call.1} parent=1 // pred_fallthru
      _
    // Predicated region
    $region14: #{tpu_custom_call.1} parent=1 // pred_check
      _
    $region15: #{tpu_custom_call.1} parent=1 // pred_check_branch
      %38 = sbr.rel (0) target = $region17
    $region16: #{tpu_custom_call.1} parent=1 // pred_region
      %39 = dma.done [#allocation4], 768
    $region17: #{tpu_custom_call.1} parent=1 // pred_fallthru
      _
    // Predicated region
    $region18: #{tpu_custom_call.1} parent=1 // pred_check
      _
    $region19: #{tpu_custom_call.1} parent=1 // pred_check_branch
      %41 = sbr.rel (0) target = $region21
    $region20: #{tpu_custom_call.1} parent=1 // pred_region
      %42 = dma.done [#allocation7], 768
    $region21: #{tpu_custom_call.1} parent=1 // pred_fallthru
      _
    %p43 = scmp.eq.s32.totalorder 0, 0
    %p44 = scmp.eq.s32.totalorder 0, 0
    %p45 = pnand %p43, %p44
    %p46 = pneg %p45
    // Predicated region
    $region22: #{tpu_custom_call.1} parent=1 // pred_check
      _
    $region23: #{tpu_custom_call.1} parent=1 // pred_check_branch
      %48 = sbr.rel (%p45) target = $region25
    $region24: #{tpu_custom_call.1} parent=1 // pred_region
      %49 = vst [vmem:[#allocation2] sm:$0xff] 0.0
      %50 = vst [vmem:[#allocation2 + $0x8] sm:$0xff] 0.0
      %51 = vst [vmem:[#allocation2 + $0x10] sm:$0xff] 0.0
      %52 = vst [vmem:[#allocation2 + $0x18] sm:$0xff] 0.0
      %53 = vst [vmem:[#allocation2 + $0x20] sm:$0xff] 0.0
      %54 = vst [vmem:[#allocation2 + $0x28] sm:$0xff] 0.0
    $region25: #{tpu_custom_call.1} parent=1 // pred_fallthru
      _
    %s55 = smul.u32 0, 16
    %v56 = vlaneseq
    %v57 = vshrl.u32 %v56, 7
    %v58 = vadd.s32 %v57, 8
    %v59 = vstv %s55
    %v60 = vadd.s32 %v59, %v57
    %v61 = vadd.s32 %v59, %v58
    %s62 = smul.u32 0, 384
    %v63 = vlaneseq
    %v64 = vand.u32 %v63, 127
    %v65 = vadd.s32 %v64, 128
    %v66 = vadd.s32 %v64, 256
    %v67 = vstv %s62
    %v68 = vadd.s32 %v67, %v64
    %v69 = vadd.s32 %v67, %v65
    %v70 = vadd.s32 %v67, %v66
    %v71 = vld [vmem:[%s2] sm:$0xff]
    %v72 = vld [vmem:[%s2 + $0x8] sm:$0xff]
    %73 = vset.pattern.permute.xlu0 0
    %74 = vperm.xlu0 %73, %v71
    %v75 = vpop.permute.xlu0 %74
    %76 = vset.pattern.permute.xlu0 0
    %77 = vperm.xlu0 %76, %v72
    %v78 = vpop.permute.xlu0 %77
    %vm79 = vcmp.lt.s32.totalorder %v68, %v75
    %vm80 = vcmp.lt.s32.totalorder %v69, %v75
    %vm81 = vcmp.lt.s32.totalorder %v70, %v75
    %vm82 = vcmp.lt.s32.totalorder %v68, %v78
    %vm83 = vcmp.lt.s32.totalorder %v69, %v78
    %vm84 = vcmp.lt.s32.totalorder %v70, %v78
    %vm85 = vcmp.lt.s32.totalorder %v60, 15
    %vm86 = vcmp.lt.s32.totalorder %v61, 15
    %vm87 = vmand %vm79, %vm85
    %vm88 = vmand %vm80, %vm85
    %vm89 = vmand %vm81, %vm85
    %vm90 = vmand %vm82, %vm86
    %vm91 = vmand %vm83, %vm86
    %vm92 = vmand %vm84, %vm86
    %vm93 = vcmp.lt.s32.totalorder %v68, 300
    %vm94 = vcmp.lt.s32.totalorder %v69, 300
    %vm95 = vcmp.lt.s32.totalorder %v70, 300
    %vm96 = vmand %vm87, %vm93
    %vm97 = vmand %vm88, %vm94
    %vm98 = vmand %vm89, %vm95
    %vm99 = vmand %vm90, %vm93
    %vm100 = vmand %vm91, %vm94
    %vm101 = vmand %vm92, %vm95
    %v102 = vld [vmem:[#allocation3] sm:$0xff]
    %v103 = vld [vmem:[#allocation3 + $0x8] sm:$0xff]
    %v104 = vld [vmem:[#allocation3 + $0x10] sm:$0xff]
    %v105 = vld [vmem:[#allocation3 + $0x18] sm:$0xff]
    %v106 = vld [vmem:[#allocation3 + $0x20] sm:$0xff]
    %v107 = vld [vmem:[#allocation3 + $0x28] sm:$0xff]
    %v108 = vld [vmem:[#allocation6] sm:$0xff]
    %v109 = vld [vmem:[#allocation6 + $0x8] sm:$0xff]
    %v110 = vld [vmem:[#allocation6 + $0x10] sm:$0xff]
    %v111 = vld [vmem:[#allocation6 + $0x18] sm:$0xff]
    %v112 = vld [vmem:[#allocation6 + $0x20] sm:$0xff]
    %v113 = vld [vmem:[#allocation6 + $0x28] sm:$0xff]
    %v114 = vsub.f32 %v102, %v108
    %v115 = vsub.f32 %v103, %v109
    %v116 = vsub.f32 %v104, %v110
    %v117 = vsub.f32 %v105, %v111
    %v118 = vsub.f32 %v106, %v112
    %v119 = vsub.f32 %v107, %v113
    %v120 = vld [vmem:[#allocation2] sm:$0xff]
    %v121 = vld [vmem:[#allocation2 + $0x8] sm:$0xff]
    %v122 = vld [vmem:[#allocation2 + $0x10] sm:$0xff]
    %v123 = vld [vmem:[#allocation2 + $0x18] sm:$0xff]
    %v124 = vld [vmem:[#allocation2 + $0x20] sm:$0xff]
    %v125 = vld [vmem:[#allocation2 + $0x28] sm:$0xff]
    %v126 = vmul.f32 %v114, %v114
    %v127 = vmul.f32 %v115, %v115
    %v128 = vmul.f32 %v116, %v116
    %v129 = vmul.f32 %v117, %v117
    %v130 = vmul.f32 %v118, %v118
    %v131 = vmul.f32 %v119, %v119
    %v132 = vsel %vm96, %v126, 0.0
    %v133 = vsel %vm97, %v127, 0.0
    %v134 = vsel %vm98, %v128, 0.0
    %v135 = vsel %vm99, %v129, 0.0
    %v136 = vsel %vm100, %v130, 0.0
    %v137 = vsel %vm101, %v131, 0.0
    %v138 = vadd.f32 %v120, %v132
    %v139 = vadd.f32 %v121, %v133
    %v140 = vadd.f32 %v122, %v134
    %v141 = vadd.f32 %v123, %v135
    %v142 = vadd.f32 %v124, %v136
    %v143 = vadd.f32 %v125, %v137
    %144 = vst [vmem:[#allocation2] sm:$0xff] %v138
    %145 = vst [vmem:[#allocation2 + $0x8] sm:$0xff] %v139
    %146 = vst [vmem:[#allocation2 + $0x10] sm:$0xff] %v140
    %147 = vst [vmem:[#allocation2 + $0x18] sm:$0xff] %v141
    %148 = vst [vmem:[#allocation2 + $0x20] sm:$0xff] %v142
    %149 = vst [vmem:[#allocation2 + $0x28] sm:$0xff] %v143
    // Predicated region
    $region26: #{tpu_custom_call.1} parent=1 // pred_check
      _
    $region27: #{tpu_custom_call.1} parent=1 // pred_check_branch
      %151 = sbr.rel (%p45) target = $region29
    $region28: #{tpu_custom_call.1} parent=1 // pred_region
      %v152 = vld [vmem:[#allocation2] sm:$0xff]
      %v153 = vld [vmem:[#allocation2 + $0x8] sm:$0xff]
      %v154 = vld [vmem:[#allocation2 + $0x10] sm:$0xff]
      %v155 = vld [vmem:[#allocation2 + $0x18] sm:$0xff]
      %v156 = vld [vmem:[#allocation2 + $0x20] sm:$0xff]
      %v157 = vld [vmem:[#allocation2 + $0x28] sm:$0xff]
      %v158 = vadd.f32 %v152, %v153
      %v159 = vadd.f32 %v158, %v154
      %v160 = vadd.f32 %v159, %v155
      %v161 = vadd.f32 %v160, %v156
      %v162 = vadd.f32 %v161, %v157
      %163 = vadd.xlane.f32.xlu0 %v162
      %v164 = vpop.xlane.xlu0 %163
      %v165 = vrot.slane %v164, 4
      %v166 = vadd.f32 %v164, %v165
      %v167 = vrot.slane %v166, 2
      %v168 = vadd.f32 %v166, %v167
      %v169 = vrot.slane %v168, 1
      %v170 = vadd.f32 %v168, %v169
      %s171 = vtos %v170
      %s172 = scalar_lea.smem [#allocation8], 0
      %173 = sst [smem:[%s172]] %s171
    $region29: #{tpu_custom_call.1} parent=1 // pred_fallthru
      _
    // Predicated region
    $region30: #{tpu_custom_call.1} parent=1 // pred_check
      _
    $region31: #{tpu_custom_call.1} parent=1 // pred_check_branch
      %175 = sbr.rel (0) target = $region33
    $region32: #{tpu_custom_call.1} parent=1 // pred_region
      %s177 = ssub.s32 16, 16
      %178 = vsyncadd [#allocation5], %s177
      %181 = dma.smem_to_hbm [#allocation8], 16, %s3, [#allocation5]
    $region33: #{tpu_custom_call.1} parent=1 // pred_fallthru
      _
    // Predicated region
    $region34: #{tpu_custom_call.1} parent=1 // pred_check
      _
    $region35: #{tpu_custom_call.1} parent=1 // pred_check_branch
      %183 = sbr.rel (0) target = $region37
    $region36: #{tpu_custom_call.1} parent=1 // pred_region
      %184 = dma.done [#allocation5], 16
    $region37: #{tpu_custom_call.1} parent=1 // pred_fallthru
      _
    %185 = sfence
    %186 = vsyncpa [#allocation4], 1
    %187 = vsyncpa [#allocation7], 1
    %188 = vsyncpa [#allocation5], 1

</llo_original>
